<compile_context>
chip_gen: v7x
topology: tpu7x:2x2x1
jax: 0.10.0
libtpu: 0.0.40
codegen_flags: <defaults>
</compile_context>

<pallas_src>
import jax
import jax.numpy as jnp
from jax.experimental import pallas as pl
from jax.experimental.pallas import tpu as pltpu

_LANES = 128
_TARGET_TILE_BYTES = 2 * 1024 * 1024   # ~2 MiB per buffer (x3 operands x2 bufs = 12 MiB)
_MIN_TILE_ROWS = 256                   # >=128 KiB (f32) block floor
_MIN_GRID_STEPS = 8                    # keep both v7x TensorCores streaming
_TINY_N = 128 * 1024                   # below ~512 KiB (f32) a fused XLA add is at roofline
_VMEM_LIMIT = 32 * 1024 * 1024         # >= default scoped VMEM on all generations


def _round_up(x, m):
    return ((x + m - 1) // m) * m


def _make_mix_kernel(w0, w1):
    """Elementwise  o = w0*a + w1*b  with f32 accumulation, static weights."""
    unit = (w0 == 1.0) and (w1 == 1.0)

    def kernel(a_ref, b_ref, o_ref):
        a = a_ref[...].astype(jnp.float32)
        b = b_ref[...].astype(jnp.float32)
        acc = (a + b) if unit else (w0 * a + w1 * b)
        o_ref[...] = acc.astype(o_ref.dtype)

    return kernel


def _tile_rows(rows, itemsize):
    """Dtype-aware tile rows: ~2 MiB/buffer, >= ~8 grid steps, 256-row floor."""
    target = max(_MIN_TILE_ROWS,
                 (_TARGET_TILE_BYTES // (_LANES * itemsize)) // 8 * 8)
    # Enough grid steps for both v7x TCs before growing tiles, but never below
    # the 256-row floor where per-step overhead dominates.
    steps_cap = max(_MIN_TILE_ROWS, _round_up(pl.cdiv(rows, _MIN_GRID_STEPS), 8))
    tr = min(target, steps_cap, _round_up(rows, 8))
    return max(8, tr)


def _mix_slab(a2, b2, w0, w1, out_dtype):
    """Run the row-tiled Pallas kernel on lane-dense (rows, 128) slabs."""
    rows = a2.shape[0]
    out_itemsize = jnp.dtype(out_dtype).itemsize
    itemsize = max(a2.dtype.itemsize, b2.dtype.itemsize, out_itemsize)
    tr = _tile_rows(rows, itemsize)
    grid = (pl.cdiv(rows, tr),)

    n = rows * _LANES
    cost = pl.CostEstimate(
        flops=2 * n,
        transcendentals=0,
        bytes_accessed=n * (a2.dtype.itemsize + b2.dtype.itemsize + out_itemsize),
    )

    # TODO(synk): optionally sweep pipeline_mode=pl.Buffered(3) on the input
    # BlockSpecs for v5e (lowest HBM BW); keep only if a measured win.
    return pl.pallas_call(
        _make_mix_kernel(w0, w1),
        out_shape=jax.ShapeDtypeStruct((rows, _LANES), out_dtype),
        grid=grid,
        in_specs=[
            pl.BlockSpec((tr, _LANES), lambda i: (i, 0)),
            pl.BlockSpec((tr, _LANES), lambda i: (i, 0)),
        ],
        out_specs=pl.BlockSpec((tr, _LANES), lambda i: (i, 0)),
        compiler_params=pltpu.CompilerParams(
            dimension_semantics=("parallel",),
            vmem_limit_bytes=_VMEM_LIMIT,
        ),
        cost_estimate=cost,
    )(a2, b2)


def loss_mixer(loss_a, loss_b, loss_weights=(1.0, 1.0)):
    """Weighted sum of two same-shape loss tensors (LossMixer.forward)."""
    assert loss_a.shape == loss_b.shape, "loss_a and loss_b must have same shape"
    # The reference module uses static Python weights ([1, 1]); bake them in.
    # TODO(synk): if weights ever become traced arrays, route them through an
    # SMEM (2,) operand instead of closing over Python floats (float() below
    # raises on tracers, which at least fails loudly).
    w0 = float(loss_weights[0])
    w1 = float(loss_weights[1])

    orig_shape = loss_a.shape
    out_dtype = jnp.result_type(loss_a.dtype, loss_b.dtype)

    a = jnp.asarray(loss_a).reshape(-1)
    b = jnp.asarray(loss_b).reshape(-1)
    n = a.shape[0]

    # Integer / bool losses (not a real LossMixer use-case): match PyTorch's
    # Python-scalar-weight promotion in plain JAX and skip the f32-accumulating
    # Pallas kernel so integer results are never truncated.
    if not jnp.issubdtype(out_dtype, jnp.floating):
        if w0.is_integer() and w1.is_integer():
            out = int(w0) * a.astype(out_dtype) + int(w1) * b.astype(out_dtype)
        else:
            out = w0 * a.astype(jnp.float32) + w1 * b.astype(jnp.float32)
        return out.reshape(orig_shape)

    def _mix_jax(x, y):
        acc = w0 * x.astype(jnp.float32) + w1 * y.astype(jnp.float32)
        return acc.astype(out_dtype)

    # Tiny / scalar losses (the typical LossMixer input) and lane-unaligned
    # element counts: a single fused XLA elementwise op is already at the
    # 3n-byte HBM roofline, so Pallas has no headroom and dispatch + DMA setup
    # would be pure overhead. This also eliminates the old bulk + tail +
    # jnp.concatenate path, which re-read/re-wrote the whole output (~+60%
    # HBM traffic) for unaligned shapes.
    if n < _TINY_N or (n % _LANES) != 0:
        return _mix_jax(a, b).reshape(orig_shape)

    # Lane-aligned bulk through Pallas: pure bitcast reshape to (rows, 128),
    # partial last row-block handled by Pallas' masked stores.
    a2 = a.reshape(-1, _LANES)
    b2 = b.reshape(-1, _LANES)
    out = _mix_slab(a2, b2, w0, w1, out_dtype)
    return out.reshape(orig_shape)


# TODO(synk): update_weights raises NotImplementedError in the reference
# module; nothing to implement on the kernel side.


if __name__ == "__main__":
    key = jax.random.PRNGKey(0)
    k = jax.random.split(key, 10)

    # Case 1: large lane-aligned f32 loss map -> Pallas path, multi-step grid
    # (2*4*256*128 = 262144 elems, rows=2048, tr=256 -> 8 grid steps).
    a1 = jax.random.normal(k[0], (2, 4, 256, 128), dtype=jnp.float32)
    b1 = jax.random.normal(k[1], (2, 4, 256, 128), dtype=jnp.float32)
    o1 = jax.block_until_ready(loss_mixer(a1, b1, loss_weights=(1.0, 1.0)))
    assert o1.shape == a1.shape and o1.dtype == jnp.float32
    assert jnp.allclose(o1, a1 + b1, atol=1e-6, rtol=1e-6)

    # Case 2: lane-aligned but rows NOT a multiple of the tile rows
    # (2*4*250*128 = 256000 elems -> rows=2000, tr=256 -> masked partial block).
    a2 = jax.random.normal(k[2], (2, 4, 250, 128), dtype=jnp.float32)
    b2 = jax.random.normal(k[3], (2, 4, 250, 128), dtype=jnp.float32)
    o2 = jax.block_until_ready(loss_mixer(a2, b2, loss_weights=(0.3, 0.7)))
    assert jnp.allclose(o2, 0.3 * a2 + 0.7 * b2, atol=1e-5, rtol=1e-5)

    # Case 3: scalar losses (the typical LossMixer use) -> tiny plain-JAX path.
    sa = jax.random.normal(k[4], (), dtype=jnp.float32)
    sb = jax.random.normal(k[5], (), dtype=jnp.float32)
    os_ = jax.block_until_ready(loss_mixer(sa, sb, loss_weights=(1.0, 1.0)))
    assert jnp.allclose(os_, sa + sb, atol=1e-6, rtol=1e-6)

    # Case 4: bf16 loss maps -> bf16 on the wire, f32 accumulate in-kernel.
    a4 = jax.random.normal(k[6], (2, 4, 256, 128), dtype=jnp.bfloat16)
    b4 = jax.random.normal(k[7], (2, 4, 256, 128), dtype=jnp.bfloat16)
    o4 = jax.block_until_ready(loss_mixer(a4, b4, loss_weights=(1.0, 1.0)))
    ref4 = (a4.astype(jnp.float32) + b4.astype(jnp.float32)).astype(jnp.bfloat16)
    assert o4.dtype == jnp.bfloat16
    assert jnp.allclose(o4.astype(jnp.float32), ref4.astype(jnp.float32),
                        atol=1e-2, rtol=1e-2)

    # Case 5: lane-unaligned element count + non-unit weights -> fused XLA path
    # (no concatenate, minimum HBM traffic).
    a5 = jax.random.normal(k[8], (3, 5, 67, 41), dtype=jnp.float32)
    b5 = jax.random.normal(k[9], (3, 5, 67, 41), dtype=jnp.float32)
    o5 = jax.block_until_ready(loss_mixer(a5, b5, loss_weights=(0.3, 0.7)))
    assert jnp.allclose(o5, 0.3 * a5 + 0.7 * b5, atol=1e-5, rtol=1e-5)

    print("KERNEL_OK")
</pallas_src>

<mosaic_0001>
module attributes {stable_mosaic.version = 11 : i64} {
  func.func @kernel(%arg0: i32, %arg1: memref<256x128xf32, #tpu.memory_space<vmem>>, %arg2: memref<256x128xf32, #tpu.memory_space<vmem>>, %arg3: memref<256x128xf32, #tpu.memory_space<vmem>>) attributes {dimension_semantics = [#tpu.dimension_semantics<parallel>], iteration_bounds = array<i64: 8>, scalar_prefetch = 0 : i64, scratch_operands = 0 : i64, tpu.core_type = #tpu.core_type<tc>, window_params = [{transform_indices = @transform_0, window_bounds = array<i64: 256, 128>}, {transform_indices = @transform_1, window_bounds = array<i64: 256, 128>}, {transform_indices = @transform_2, window_bounds = array<i64: 256, 128>}]} {
    %c0 = arith.constant 0 : index
    %c0_0 = arith.constant 0 : index
    %0 = vector.load %arg1[%c0, %c0_0] : memref<256x128xf32, #tpu.memory_space<vmem>>, vector<256x128xf32>
    %c0_1 = arith.constant 0 : index
    %c0_2 = arith.constant 0 : index
    %1 = vector.load %arg2[%c0_1, %c0_2] : memref<256x128xf32, #tpu.memory_space<vmem>>, vector<256x128xf32>
    %2 = arith.addf %0, %1 : vector<256x128xf32>
    %c0_3 = arith.constant 0 : index
    %c0_4 = arith.constant 0 : index
    %3 = vector.load %arg3[%c0_3, %c0_4] : memref<256x128xf32, #tpu.memory_space<vmem>>, vector<256x128xf32>
    tpu.vector_store %arg3[%c0_3, %c0_4], %2 {strides = array<i32>} : memref<256x128xf32, #tpu.memory_space<vmem>>, vector<256x128xf32>,
    return
  }
  func.func @transform_0(%arg0: i32) -> (i32, i32) {
    %c0_i32 = arith.constant 0 : i32
    %c0_i32_0 = arith.constant 0 : i32
    return %arg0, %c0_i32 : i32, i32
  }
  func.func @transform_1(%arg0: i32) -> (i32, i32) {
    %c0_i32 = arith.constant 0 : i32
    %c0_i32_0 = arith.constant 0 : i32
    return %arg0, %c0_i32 : i32, i32
  }
  func.func @transform_2(%arg0: i32) -> (i32, i32) {
    %c0_i32 = arith.constant 0 : i32
    %c0_i32_0 = arith.constant 0 : i32
    return %arg0, %c0_i32 : i32, i32
  }
}

</mosaic_0001>

<llo_original>
// kernel: tpu_custom_call.1
$region0: #{tpu_custom_call.1}
  #allocation0 [shape = 'u32[]', space=smem, size = 0x4, offset = 0x4, fixed_abs, tag = 'smem constant byte address 0x4 - core index']
  #allocation1 [shape = 'u32[144,128]{1,0:T(1,128)}', space=vmem, size = 0x12000, scoped, tag = 'internal scratch']
  %s0 = inlined_call_operand.hbm [shape: f32[2048,128], index: 0, kind: input, shape index: {}]
  %s1 = inlined_call_operand.hbm [shape: f32[2048,128], index: 1, kind: input, shape index: {}]
  %s2 = inlined_call_operand.hbm [shape: f32[2048,128], index: 2, kind: output, shape index: {}]
  %s3 = sld [smem:[#allocation0]]
  $region49: #{tpu_custom_call.1} parent=0
    _
  %s5 = ssub.s32 1, %s3
  %s6 = scalar_select 0, %s5, %s3
  $region1: #{tpu_custom_call.1} parent=0
    #allocation2 [shape = 'u8[262144]{0}', space=vmem, size = 0x40000, scoped, tag = 'input window, operand 0']
    #allocation3 [shape = 's32[2]{0}', space=sflag, size = 0x8, scoped, tag = 'scoped memory for tpu_custom_call.1']
    #allocation4 [shape = 's32[2]{0}', space=sflag, size = 0x8, scoped, tag = 'scoped memory for tpu_custom_call.1']
    #allocation5 [shape = 'u8[262144]{0}', space=vmem, size = 0x40000, scoped, tag = 'input window, operand 1']
    #allocation6 [shape = 's32[2]{0}', space=sflag, size = 0x8, scoped, tag = 'scoped memory for tpu_custom_call.1']
    #allocation7 [shape = 'u8[262144]{0}', space=vmem, size = 0x40000, scoped, tag = 'output window, operand 0']
    %7 = vsyncpa [#allocation3], 0
    %s8 = scalar_lea.sflag [#allocation3], 1
    %9 = vsyncpa %s8, 0
    %10 = vsyncpa [#allocation6], 0
    %s11 = scalar_lea.sflag [#allocation6], 1
    %12 = vsyncpa %s11, 0
    %13 = vsyncpa [#allocation4], 0
    %s14 = scalar_lea.sflag [#allocation4], 1
    %15 = vsyncpa %s14, 0
    loop: start=0, step=1, limit=10
    $region2: #{tpu_custom_call.1} parent=1 // loop_pre_header
      _
    $region3: #{tpu_custom_call.1} parent=1 // loop_header
      %s17 = sphi 0, %s21
      %p18 = scmp.ge.s32.totalorder %s17, 10
      %s27 = sphi 0, %s29
      %s30 = sphi 0, %s27
      %s31 = sphi 0, %s30
      %s47 = sphi 0, %s31
      %s53 = sphi 0, %s55
      %s56 = sphi 0, %s53
      %s57 = sphi 0, %s56
      %s73 = sphi 0, %s57
      %s79 = sphi 0, %s81
      %s82 = sphi 0, %s79
      %s83 = sphi 0, %s82
      %s99 = sphi 0, %s83
    $region4: #{tpu_custom_call.1} parent=1 // loop_header_branch
      %20 = sbr.rel (%p18) target = $region8
    $region5: #{tpu_custom_call.1} parent=1 // loop_body
      %s22 = ssub.s32 %s17, 1
      %s23 = ssub.s32 %s17, 2
      %s24 = sadd.s32 %s17, 1
      %s25 = ssub.s32 %s17, %s24
      %p26 = scmp.eq.s32.totalorder %s25, 0
      %s28 = sadd.s32 %s27, 1
      %s29 = scalar_select %p26, %s27, %s28
      %p32 = pneg %p26
      %p33 = scmp.eq.s32.totalorder %s17, 7
      %p34 = por %p32, %p33
      %p35 = scmp.ne.s32.totalorder %s27, %s30
      %p36 = scmp.eq.s32.totalorder %s17, 0
      %p37 = por %p35, %p36
      %p38 = scmp.ne.s32.totalorder %s27, %s30
      %p39 = scmp.eq.s32.totalorder %s22, 7
      %p40 = por %p38, %p39
      %p41 = scmp.ne.s32.totalorder %s30, %s31
      %p42 = scmp.eq.s32.totalorder %s22, 0
      %p43 = por %p41, %p42
      %p44 = scmp.ne.s32.totalorder %s30, %s31
      %p45 = scmp.eq.s32.totalorder %s23, 7
      %p46 = por %p44, %p45
      %p48 = scmp.ne.s32.totalorder %s31, %s47
      %p49 = scmp.eq.s32.totalorder %s23, 0
      %p50 = por %p48, %p49
      %s51 = ssub.s32 %s17, %s24
      %p52 = scmp.eq.s32.totalorder %s51, 0
      %s54 = sadd.s32 %s53, 1
      %s55 = scalar_select %p52, %s53, %s54
      %p58 = pneg %p52
      %p59 = scmp.eq.s32.totalorder %s17, 7
      %p60 = por %p58, %p59
      %p61 = scmp.ne.s32.totalorder %s53, %s56
      %p62 = scmp.eq.s32.totalorder %s17, 0
      %p63 = por %p61, %p62
      %p64 = scmp.ne.s32.totalorder %s53, %s56
      %p65 = scmp.eq.s32.totalorder %s22, 7
      %p66 = por %p64, %p65
      %p67 = scmp.ne.s32.totalorder %s56, %s57
      %p68 = scmp.eq.s32.totalorder %s22, 0
      %p69 = por %p67, %p68
      %p70 = scmp.ne.s32.totalorder %s56, %s57
      %p71 = scmp.eq.s32.totalorder %s23, 7
      %p72 = por %p70, %p71
      %p74 = scmp.ne.s32.totalorder %s57, %s73
      %p75 = scmp.eq.s32.totalorder %s23, 0
      %p76 = por %p74, %p75
      %s77 = ssub.s32 %s17, %s24
      %p78 = scmp.eq.s32.totalorder %s77, 0
      %s80 = sadd.s32 %s79, 1
      %s81 = scalar_select %p78, %s79, %s80
      %p84 = pneg %p78
      %p85 = scmp.eq.s32.totalorder %s17, 7
      %p86 = por %p84, %p85
      %p87 = scmp.ne.s32.totalorder %s79, %s82
      %p88 = scmp.eq.s32.totalorder %s17, 0
      %p89 = por %p87, %p88
      %p90 = scmp.ne.s32.totalorder %s79, %s82
      %p91 = scmp.eq.s32.totalorder %s22, 7
      %p92 = por %p90, %p91
      %p93 = scmp.ne.s32.totalorder %s82, %s83
      %p94 = scmp.eq.s32.totalorder %s22, 0
      %p95 = por %p93, %p94
      %p96 = scmp.ne.s32.totalorder %s82, %s83
      %p97 = scmp.eq.s32.totalorder %s23, 7
      %p98 = por %p96, %p97
      %p100 = scmp.ne.s32.totalorder %s83, %s99
      %p101 = scmp.eq.s32.totalorder %s23, 0
      %p102 = por %p100, %p101
      %p103 = scmp.le.s32.totalorder 1, %s17
      %p104 = scmp.lt.s32.totalorder %s17, 9
      %p105 = pnand %p103, %p104
      %p106 = pneg %p105
      // Predicated region
      $region9: #{tpu_custom_call.1} parent=5 // pred_check
        _
      $region10: #{tpu_custom_call.1} parent=5 // pred_check_branch
        %108 = sbr.rel (%p105) target = $region12
      $region11: #{tpu_custom_call.1} parent=5 // pred_region
        %s109 = ssub.s32 %s17, 1
      $region12: #{tpu_custom_call.1} parent=5 // pred_fallthru
        _
      %p110 = scmp.lt.s32.totalorder %s17, 8
      // Predicated region
      $region13: #{tpu_custom_call.1} parent=5 // pred_check
        %p111 = pneg %p110
      $region14: #{tpu_custom_call.1} parent=5 // pred_check_branch
        %113 = sbr.rel (%p111) target = $region16
      $region15: #{tpu_custom_call.1} parent=5 // pred_region
        // Predicated region
        $region17: #{tpu_custom_call.1} parent=15 // pred_check
          %p114 = pneg %p37
        $region18: #{tpu_custom_call.1} parent=15 // pred_check_branch
          %116 = sbr.rel (%p114) target = $region20
        $region19: #{tpu_custom_call.1} parent=15 // pred_region
          %s117 = sand.u32 %s27, 1
          %s118 = scalar_lea.sflag [#allocation3], %s117
          %s119 = sand.u32 %s27, 1
          %s120 = smul.addr %s119, 256
          %s121 = scalar_lea.vmem [#allocation2], %s120
          %s122 = smul.u32 32, %s17
          %s124 = ssub.s32 4096, 4096
          %125 = vsyncadd %s118, %s124
          %s126 = smul.addr %s122, 128
          %s127 = scalar_lea.hbm %s0, %s126
          %s128 = sshll.u32 %s121, 4
          %s129 = int_to_ptr.vmem [resolvable:$true] %s128
          %134 = dma.hbm_to_vmem [thread:$0]  %s127, 4096, %s129, %s118, 128, 128, 8
        $region20: #{tpu_custom_call.1} parent=15 // pred_fallthru
          _
        // Predicated region
        $region21: #{tpu_custom_call.1} parent=15 // pred_check
          %p135 = pneg %p63
        $region22: #{tpu_custom_call.1} parent=15 // pred_check_branch
          %137 = sbr.rel (%p135) target = $region24
        $region23: #{tpu_custom_call.1} parent=15 // pred_region
          %s138 = sand.u32 %s53, 1
          %s139 = scalar_lea.sflag [#allocation6], %s138
          %s140 = sand.u32 %s53, 1
          %s141 = smul.addr %s140, 256
          %s142 = scalar_lea.vmem [#allocation5], %s141
          %s143 = smul.u32 32, %s17
          %s145 = ssub.s32 4096, 4096
          %146 = vsyncadd %s139, %s145
          %s147 = smul.addr %s143, 128
          %s148 = scalar_lea.hbm %s1, %s147
          %s149 = sshll.u32 %s142, 4
          %s150 = int_to_ptr.vmem [resolvable:$true] %s149
          %155 = dma.hbm_to_vmem [thread:$0]  %s148, 4096, %s150, %s139, 128, 128, 8
        $region24: #{tpu_custom_call.1} parent=15 // pred_fallthru
          _
      $region16: #{tpu_custom_call.1} parent=5 // pred_fallthru
        _
      %p156 = scmp.le.s32.totalorder 1, %s17
      %p157 = scmp.lt.s32.totalorder %s17, 9
      %p158 = pnand %p156, %p157
      %p159 = pneg %p158
      // Predicated region
      $region25: #{tpu_custom_call.1} parent=5 // pred_check
        _
      $region26: #{tpu_custom_call.1} parent=5 // pred_check_branch
        %161 = sbr.rel (%p158) target = $region28
      $region27: #{tpu_custom_call.1} parent=5 // pred_region
        %s162 = ssub.s32 %s17, 1
        %s163 = sand.u32 %s30, 1
        %s164 = scalar_lea.sflag [#allocation3], %s163
        %s165 = sand.u32 %s30, 1
        %s166 = smul.addr %s165, 256
        %s167 = scalar_lea.vmem [#allocation2], %s166
        // Predicated region
        $region29: #{tpu_custom_call.1} parent=27 // pred_check
          %p168 = pneg %p43
        $region30: #{tpu_custom_call.1} parent=27 // pred_check_branch
          %170 = sbr.rel (%p168) target = $region32
        $region31: #{tpu_custom_call.1} parent=27 // pred_region
          %171 = dma.done %s164, 4096
        $region32: #{tpu_custom_call.1} parent=27 // pred_fallthru
          _
        %s172 = sand.u32 %s56, 1
        %s173 = scalar_lea.sflag [#allocation6], %s172
        %s174 = sand.u32 %s56, 1
        %s175 = smul.addr %s174, 256
        %s176 = scalar_lea.vmem [#allocation5], %s175
        // Predicated region
        $region33: #{tpu_custom_call.1} parent=27 // pred_check
          %p177 = pneg %p69
        $region34: #{tpu_custom_call.1} parent=27 // pred_check_branch
          %179 = sbr.rel (%p177) target = $region36
        $region35: #{tpu_custom_call.1} parent=27 // pred_region
          %180 = dma.done %s173, 4096
        $region36: #{tpu_custom_call.1} parent=27 // pred_fallthru
          _
        %s181 = sand.u32 %s30, 1
        %s182 = scalar_lea.sflag [#allocation3], %s181
        %s183 = sand.u32 %s30, 1
        %s184 = smul.addr %s183, 256
        %s185 = scalar_lea.vmem [#allocation2], %s184
        %p186 = pneg %p43
        %p187 = pneg %p40
        %s188 = sand.u32 %s56, 1
        %s189 = scalar_lea.sflag [#allocation6], %s188
        %s190 = sand.u32 %s56, 1
        %s191 = smul.addr %s190, 256
        %s192 = scalar_lea.vmem [#allocation5], %s191
        %p193 = pneg %p69
        %p194 = pneg %p66
        %p195 = pneg %p95
        %p196 = pneg %p92
        %s197 = sand.u32 %s82, 1
        %s198 = scalar_lea.sflag [#allocation4], %s197
        %s199 = sand.u32 %s82, 1
        %s200 = smul.addr %s199, 256
        %s201 = scalar_lea.vmem [#allocation7], %s200
        %s202 = smul.u32 32, %s22
        %s203 = smul.u32 32, %s22
        %s204 = smul.u32 32, %s22
        %v205 = vld [vmem:[%s167] sm:$0xff]
        %v206 = vld [vmem:[%s167 + $0x8] sm:$0xff]
        %v207 = vld [vmem:[%s167 + $0x10] sm:$0xff]
        %v208 = vld [vmem:[%s167 + $0x18] sm:$0xff]
        %v209 = vld [vmem:[%s167 + $0x20] sm:$0xff]
        %v210 = vld [vmem:[%s167 + $0x28] sm:$0xff]
        %v211 = vld [vmem:[%s167 + $0x30] sm:$0xff]
        %v212 = vld [vmem:[%s167 + $0x38] sm:$0xff]
        %v213 = vld [vmem:[%s167 + $0x40] sm:$0xff]
        %v214 = vld [vmem:[%s167 + $0x48] sm:$0xff]
        %v215 = vld [vmem:[%s167 + $0x50] sm:$0xff]
        %v216 = vld [vmem:[%s167 + $0x58] sm:$0xff]
        %v217 = vld [vmem:[%s167 + $0x60] sm:$0xff]
        %v218 = vld [vmem:[%s167 + $0x68] sm:$0xff]
        %v219 = vld [vmem:[%s167 + $0x70] sm:$0xff]
        %v220 = vld [vmem:[%s167 + $0x78] sm:$0xff]
        %v221 = vld [vmem:[%s167 + $0x80] sm:$0xff]
        %v222 = vld [vmem:[%s167 + $0x88] sm:$0xff]
        %v223 = vld [vmem:[%s167 + $0x90] sm:$0xff]
        %v224 = vld [vmem:[%s167 + $0x98] sm:$0xff]
        %v225 = vld [vmem:[%s167 + $0xa0] sm:$0xff]
        %v226 = vld [vmem:[%s167 + $0xa8] sm:$0xff]
        %v227 = vld [vmem:[%s167 + $0xb0] sm:$0xff]
        %v228 = vld [vmem:[%s167 + $0xb8] sm:$0xff]
        %v229 = vld [vmem:[%s167 + $0xc0] sm:$0xff]
        %v230 = vld [vmem:[%s167 + $0xc8] sm:$0xff]
        %v231 = vld [vmem:[%s167 + $0xd0] sm:$0xff]
        %v232 = vld [vmem:[%s167 + $0xd8] sm:$0xff]
        %v233 = vld [vmem:[%s167 + $0xe0] sm:$0xff]
        %v234 = vld [vmem:[%s167 + $0xe8] sm:$0xff]
        %v235 = vld [vmem:[%s167 + $0xf0] sm:$0xff]
        %v236 = vld [vmem:[%s167 + $0xf8] sm:$0xff]
        %v237 = vld [vmem:[%s176] sm:$0xff]
        %v238 = vld [vmem:[%s176 + $0x8] sm:$0xff]
        %v239 = vld [vmem:[%s176 + $0x10] sm:$0xff]
        %v240 = vld [vmem:[%s176 + $0x18] sm:$0xff]
        %v241 = vld [vmem:[%s176 + $0x20] sm:$0xff]
        %v242 = vld [vmem:[%s176 + $0x28] sm:$0xff]
        %v243 = vld [vmem:[%s176 + $0x30] sm:$0xff]
        %v244 = vld [vmem:[%s176 + $0x38] sm:$0xff]
        %v245 = vld [vmem:[%s176 + $0x40] sm:$0xff]
        %v246 = vld [vmem:[%s176 + $0x48] sm:$0xff]
        %v247 = vld [vmem:[%s176 + $0x50] sm:$0xff]
        %v248 = vld [vmem:[%s176 + $0x58] sm:$0xff]
        %v249 = vld [vmem:[%s176 + $0x60] sm:$0xff]
        %v250 = vld [vmem:[%s176 + $0x68] sm:$0xff]
        %v251 = vld [vmem:[%s176 + $0x70] sm:$0xff]
        %v252 = vld [vmem:[%s176 + $0x78] sm:$0xff]
        %v253 = vld [vmem:[%s176 + $0x80] sm:$0xff]
        %v254 = vld [vmem:[%s176 + $0x88] sm:$0xff]
        %v255 = vld [vmem:[%s176 + $0x90] sm:$0xff]
        %v256 = vld [vmem:[%s176 + $0x98] sm:$0xff]
        %v257 = vld [vmem:[%s176 + $0xa0] sm:$0xff]
        %v258 = vld [vmem:[%s176 + $0xa8] sm:$0xff]
        %v259 = vld [vmem:[%s176 + $0xb0] sm:$0xff]
        %v260 = vld [vmem:[%s176 + $0xb8] sm:$0xff]
        %v261 = vld [vmem:[%s176 + $0xc0] sm:$0xff]
        %v262 = vld [vmem:[%s176 + $0xc8] sm:$0xff]
        %v263 = vld [vmem:[%s176 + $0xd0] sm:$0xff]
        %v264 = vld [vmem:[%s176 + $0xd8] sm:$0xff]
        %v265 = vld [vmem:[%s176 + $0xe0] sm:$0xff]
        %v266 = vld [vmem:[%s176 + $0xe8] sm:$0xff]
        %v267 = vld [vmem:[%s176 + $0xf0] sm:$0xff]
        %v268 = vld [vmem:[%s176 + $0xf8] sm:$0xff]
        %v269 = vadd.f32 %v205, %v237
        %v270 = vadd.f32 %v206, %v238
        %v271 = vadd.f32 %v207, %v239
        %v272 = vadd.f32 %v208, %v240
        %v273 = vadd.f32 %v209, %v241
        %v274 = vadd.f32 %v210, %v242
        %v275 = vadd.f32 %v211, %v243
        %v276 = vadd.f32 %v212, %v244
        %v277 = vadd.f32 %v213, %v245
        %v278 = vadd.f32 %v214, %v246
        %v279 = vadd.f32 %v215, %v247
        %v280 = vadd.f32 %v216, %v248
        %v281 = vadd.f32 %v217, %v249
        %v282 = vadd.f32 %v218, %v250
        %v283 = vadd.f32 %v219, %v251
        %v284 = vadd.f32 %v220, %v252
        %v285 = vadd.f32 %v221, %v253
        %v286 = vadd.f32 %v222, %v254
        %v287 = vadd.f32 %v223, %v255
        %v288 = vadd.f32 %v224, %v256
        %v289 = vadd.f32 %v225, %v257
        %v290 = vadd.f32 %v226, %v258
        %v291 = vadd.f32 %v227, %v259
        %v292 = vadd.f32 %v228, %v260
        %v293 = vadd.f32 %v229, %v261
        %v294 = vadd.f32 %v230, %v262
        %v295 = vadd.f32 %v231, %v263
        %v296 = vadd.f32 %v232, %v264
        %v297 = vadd.f32 %v233, %v265
        %v298 = vadd.f32 %v234, %v266
        %v299 = vadd.f32 %v235, %v267
        %v300 = vadd.f32 %v236, %v268
        %301 = vst [vmem:[%s201] sm:$0xff] %v269
        %302 = vst [vmem:[%s201 + $0x8] sm:$0xff] %v270
        %303 = vst [vmem:[%s201 + $0x10] sm:$0xff] %v271
        %304 = vst [vmem:[%s201 + $0x18] sm:$0xff] %v272
        %305 = vst [vmem:[%s201 + $0x20] sm:$0xff] %v273
        %306 = vst [vmem:[%s201 + $0x28] sm:$0xff] %v274
        %307 = vst [vmem:[%s201 + $0x30] sm:$0xff] %v275
        %308 = vst [vmem:[%s201 + $0x38] sm:$0xff] %v276
        %309 = vst [vmem:[%s201 + $0x40] sm:$0xff] %v277
        %310 = vst [vmem:[%s201 + $0x48] sm:$0xff] %v278
        %311 = vst [vmem:[%s201 + $0x50] sm:$0xff] %v279
        %312 = vst [vmem:[%s201 + $0x58] sm:$0xff] %v280
        %313 = vst [vmem:[%s201 + $0x60] sm:$0xff] %v281
        %314 = vst [vmem:[%s201 + $0x68] sm:$0xff] %v282
        %315 = vst [vmem:[%s201 + $0x70] sm:$0xff] %v283
        %316 = vst [vmem:[%s201 + $0x78] sm:$0xff] %v284
        %317 = vst [vmem:[%s201 + $0x80] sm:$0xff] %v285
        %318 = vst [vmem:[%s201 + $0x88] sm:$0xff] %v286
        %319 = vst [vmem:[%s201 + $0x90] sm:$0xff] %v287
        %320 = vst [vmem:[%s201 + $0x98] sm:$0xff] %v288
        %321 = vst [vmem:[%s201 + $0xa0] sm:$0xff] %v289
        %322 = vst [vmem:[%s201 + $0xa8] sm:$0xff] %v290
        %323 = vst [vmem:[%s201 + $0xb0] sm:$0xff] %v291
        %324 = vst [vmem:[%s201 + $0xb8] sm:$0xff] %v292
        %325 = vst [vmem:[%s201 + $0xc0] sm:$0xff] %v293
        %326 = vst [vmem:[%s201 + $0xc8] sm:$0xff] %v294
        %327 = vst [vmem:[%s201 + $0xd0] sm:$0xff] %v295
        %328 = vst [vmem:[%s201 + $0xd8] sm:$0xff] %v296
        %329 = vst [vmem:[%s201 + $0xe0] sm:$0xff] %v297
        %330 = vst [vmem:[%s201 + $0xe8] sm:$0xff] %v298
        %331 = vst [vmem:[%s201 + $0xf0] sm:$0xff] %v299
        %332 = vst [vmem:[%s201 + $0xf8] sm:$0xff] %v300
        %s333 = sand.u32 %s82, 1
        %s334 = scalar_lea.sflag [#allocation4], %s333
        %s335 = sand.u32 %s82, 1
        %s336 = smul.addr %s335, 256
        %s337 = scalar_lea.vmem [#allocation7], %s336
        // Predicated region
        $region37: #{tpu_custom_call.1} parent=27 // pred_check
          %p338 = pneg %p92
        $region38: #{tpu_custom_call.1} parent=27 // pred_check_branch
          %340 = sbr.rel (%p338) target = $region40
        $region39: #{tpu_custom_call.1} parent=27 // pred_region
          %s341 = smul.u32 32, %s22
          %s343 = ssub.s32 4096, 4096
          %344 = vsyncadd %s334, %s343
          %s345 = smul.addr %s341, 128
          %s346 = scalar_lea.hbm %s2, %s345
          %s347 = sshll.u32 %s337, 4
          %s348 = int_to_ptr.vmem [resolvable:$true] %s347
          %353 = dma.vmem_to_hbm [thread:$0]  %s348, 4096, %s346, %s334, 128, 128, 8
        $region40: #{tpu_custom_call.1} parent=27 // pred_fallthru
          _
      $region28: #{tpu_custom_call.1} parent=5 // pred_fallthru
        _
      %p354 = scmp.le.s32.totalorder 2, %s17
      // Predicated region
      $region41: #{tpu_custom_call.1} parent=5 // pred_check
        %p355 = pneg %p354
      $region42: #{tpu_custom_call.1} parent=5 // pred_check_branch
        %357 = sbr.rel (%p355) target = $region44
      $region43: #{tpu_custom_call.1} parent=5 // pred_region
        %s358 = ssub.s32 %s17, 2
        // Predicated region
        $region45: #{tpu_custom_call.1} parent=43 // pred_check
          %p359 = pneg %p98
        $region46: #{tpu_custom_call.1} parent=43 // pred_check_branch
          %361 = sbr.rel (%p359) target = $region48
        $region47: #{tpu_custom_call.1} parent=43 // pred_region
          %s362 = sand.u32 %s83, 1
          %s363 = scalar_lea.sflag [#allocation4], %s362
          %s364 = sand.u32 %s83, 1
          %s365 = smul.addr %s364, 256
          %s366 = scalar_lea.vmem [#allocation7], %s365
          %367 = dma.done %s363, 4096
        $region48: #{tpu_custom_call.1} parent=43 // pred_fallthru
          _
      $region44: #{tpu_custom_call.1} parent=5 // pred_fallthru
        _
    $region6: #{tpu_custom_call.1} parent=1 // loop_footer
      %s21 = sadd.s32 1, %s17
    $region7: #{tpu_custom_call.1} parent=1 // loop_footer_branch
      %16 = sbr.rel target = $region3
    $region8: #{tpu_custom_call.1} parent=1 // loop_exit
      _
    %368 = vsyncpa [#allocation3], 1
    %s369 = scalar_lea.sflag [#allocation3], 1
    %370 = vsyncpa %s369, 1
    %371 = vsyncpa [#allocation6], 1
    %s372 = scalar_lea.sflag [#allocation6], 1
    %373 = vsyncpa %s372, 1
    %374 = vsyncpa [#allocation4], 1
    %s375 = scalar_lea.sflag [#allocation4], 1
    %376 = vsyncpa %s375, 1

</llo_original>
